<compile_context>
chip_gen: v6e
topology: v6e:2x2x1
jax: 0.10.0
libtpu: 0.0.40
codegen_flags: <defaults>
</compile_context>

<pallas_src>
import jax
import jax.numpy as jnp
from jax import lax
from jax.experimental import pallas as pl
from jax.experimental.pallas import tpu as pltpu


def _round_up(x, m):
    return ((x + m - 1) // m) * m


# dot_general dimension numbers for A @ B.T (contract dim 1 of both operands);
# same pattern as the official TPU flash-attention kernel's q @ k^T.
_TRANS_B = (((1,), (1,)), ((), ()))


def _critic_kernel(x_ref, w1t_ref, b1_ref, w2t_ref, b2_ref, w3_ref, b3_ref,
                   o_ref):
    # Stream f32 state; cast to bf16 in-kernel (hidden under the matmuls).
    x = x_ref[...].astype(jnp.bfloat16)                          # (TB, D_in)

    # ControlNet layer 1: (H, D_in) x (TB, D_in)^T -> (H, TB), f32 accumulate.
    h1 = lax.dot_general(w1t_ref[...], x, _TRANS_B,
                         preferred_element_type=jnp.float32)     # (H, TB)
    h1 = jnp.maximum(h1 + b1_ref[...], 0.0)                      # f32 VPU

    # ControlNet layer 2: (F, H) x (H, TB) -> (F, TB).
    h2 = jnp.dot(w2t_ref[...], h1.astype(jnp.bfloat16),
                 preferred_element_type=jnp.float32)             # (F, TB)
    h2 = jnp.maximum(h2 + b2_ref[...], 0.0)

    # Critic head (single output feature): VPU multiply + cross-sublane sum
    # yields a lane-dense (1, TB) row; add the b3 scalar from SMEM.
    v = jnp.sum(h2 * w3_ref[...], axis=0, keepdims=True) + b3_ref[0]
    o_ref[...] = v.astype(o_ref.dtype)                           # (1, TB)


def _choose_tile_b(B, tile_b):
    """Batch tile = lane dim of the kernel's transposed dataflow."""
    if B <= 256:
        return B                       # one block == full batch (always legal)
    # >= 2 grid steps so both v7x TensorCores get work; 128-lane aligned.
    return max(128, min(tile_b, _round_up(pl.cdiv(B, 2), 128)))


def control_basic_critic(state, params, *, tile_b=2048):
    """state: (B, D_in) float32.  Returns V: (B, 1) float32."""
    B, D_in = state.shape
    H = params["w1"].shape[1]
    F = params["w2"].shape[1]

    TB = _choose_tile_b(B, tile_b)
    G = pl.cdiv(B, TB)

    x = jnp.asarray(state, jnp.float32)     # streamed as-is: no cast/pad pass

    # Weights pre-transposed once (tiny module constants); bf16 only on the
    # MXU operands, biases / head weight stay f32.
    w1t = params["w1"].T.astype(jnp.bfloat16)                # (H, D_in)
    w2t = params["w2"].T.astype(jnp.bfloat16)                # (F, H)
    b1c = params["b1"].reshape(H, 1).astype(jnp.float32)     # (H, 1)
    b2c = params["b2"].reshape(F, 1).astype(jnp.float32)     # (F, 1)
    w3c = params["w3"].reshape(F, 1).astype(jnp.float32)     # (F, 1)
    b3v = params["b3"].reshape(1).astype(jnp.float32)        # (1,)  -> SMEM

    resident = lambda shape: pl.BlockSpec(shape, lambda i: (0, 0))

    out = pl.pallas_call(
        _critic_kernel,
        out_shape=jax.ShapeDtypeStruct((G, 1, TB), jnp.float32),
        grid=(G,),
        in_specs=[
            pl.BlockSpec((TB, D_in), lambda i: (i, 0)),      # state (streamed)
            resident((H, D_in)),                             # w1^T (resident)
            resident((H, 1)),                                # b1
            resident((F, H)),                                # w2^T
            resident((F, 1)),                                # b2
            resident((F, 1)),                                # w3
            pl.BlockSpec(memory_space=pltpu.MemorySpace.SMEM),   # b3 scalar
        ],
        # Lane-dense output block; last two dims equal the full array dims.
        out_specs=pl.BlockSpec((None, 1, TB), lambda i: (i, 0, 0)),
        compiler_params=pltpu.CompilerParams(
            dimension_semantics=("parallel",),
        ),
    )(x, w1t, b1c, w2t, b2c, w3c, b3v)

    # (G, 1, TB) row-major slab -> (B, 1); padded edge rows are dropped here.
    return out.reshape(G * TB, 1)[:B]


def init_params(key, d_in, hidden, n_features):
    """Deterministic PyTorch-style init: U(-1/sqrt(fan_in), 1/sqrt(fan_in))."""
    ks = jax.random.split(key, 6)

    def lin(kw, kb, fan_in, fan_out):
        bound = 1.0 / jnp.sqrt(fan_in)
        w = jax.random.uniform(kw, (fan_in, fan_out), jnp.float32, -bound, bound)
        b = jax.random.uniform(kb, (1, fan_out), jnp.float32, -bound, bound)
        return w, b

    w1, b1 = lin(ks[0], ks[1], d_in, hidden)
    w2, b2 = lin(ks[2], ks[3], hidden, n_features)
    w3, b3 = lin(ks[4], ks[5], n_features, 1)
    return {"w1": w1, "b1": b1, "w2": w2, "b2": b2, "w3": w3, "b3": b3}


def _reference(state, p):
    """Pure f32 reference of the same forward pass."""
    h1 = jnp.maximum(state @ p["w1"] + p["b1"], 0.0)
    h2 = jnp.maximum(h1 @ p["w2"] + p["b2"], 0.0)
    return h2 @ p["w3"] + p["b3"]


if __name__ == "__main__":
    key = jax.random.PRNGKey(0)
    k_state, k_params, k_state2 = jax.random.split(key, 3)

    B, D_IN, HIDDEN, N_FEATURES = 8, 32, 64, 32   # small synthetic shapes

    state = jax.random.normal(k_state, (B, D_IN), jnp.float32)
    params = init_params(k_params, D_IN, HIDDEN, N_FEATURES)

    v = jax.block_until_ready(control_basic_critic(state, params))
    v_ref = _reference(state, params)
    assert v.shape == (B, 1)
    # bf16 MXU operands + f32 accumulation => loosened tolerance vs f32 ref.
    assert jnp.allclose(v, v_ref, atol=4e-2, rtol=4e-2), "mismatch vs ref (B=8)"

    # Second check: multi-step grid with a ragged edge block (B % TB != 0).
    B2 = 300
    state2 = jax.random.normal(k_state2, (B2, D_IN), jnp.float32)
    v2 = jax.block_until_ready(control_basic_critic(state2, params))
    v2_ref = _reference(state2, params)
    assert v2.shape == (B2, 1)
    assert jnp.allclose(v2, v2_ref, atol=4e-2, rtol=4e-2), "mismatch vs ref (B=300)"

    print("KERNEL_OK")
</pallas_src>

<mosaic_0001>
module attributes {stable_mosaic.version = 11 : i64} {
  func.func @_critic_kernel(%arg0: i32, %arg1: memref<8x32xf32, #tpu.memory_space<vmem>>, %arg2: memref<64x32xbf16, #tpu.memory_space<vmem>>, %arg3: memref<64x1xf32, #tpu.memory_space<vmem>>, %arg4: memref<32x64xbf16, #tpu.memory_space<vmem>>, %arg5: memref<32x1xf32, #tpu.memory_space<vmem>>, %arg6: memref<32x1xf32, #tpu.memory_space<vmem>>, %arg7: memref<1xf32, #tpu.memory_space<smem>>, %arg8: memref<1x1x8xf32, #tpu.memory_space<vmem>>) attributes {dimension_semantics = [#tpu.dimension_semantics<parallel>], iteration_bounds = array<i64: 1>, scalar_prefetch = 0 : i64, scratch_operands = 0 : i64, tpu.core_type = #tpu.core_type<tc>, window_params = [{transform_indices = @transform_0, window_bounds = array<i64: 8, 32>}, {pipeline_mode = #tpu.pipeline_mode<synchronous>, transform_indices = @transform_1, window_bounds = array<i64: 64, 32>}, {pipeline_mode = #tpu.pipeline_mode<synchronous>, transform_indices = @transform_2, window_bounds = array<i64: 64, 1>}, {pipeline_mode = #tpu.pipeline_mode<synchronous>, transform_indices = @transform_3, window_bounds = array<i64: 32, 64>}, {pipeline_mode = #tpu.pipeline_mode<synchronous>, transform_indices = @transform_4, window_bounds = array<i64: 32, 1>}, {pipeline_mode = #tpu.pipeline_mode<synchronous>, transform_indices = @transform_5, window_bounds = array<i64: 32, 1>}, {transform_indices = @transform_6, window_bounds = array<i64: 1>}, {transform_indices = @transform_7, window_bounds = array<i64: 1, 1, 8>}]} {
    %c0 = arith.constant 0 : index
    %c0_0 = arith.constant 0 : index
    %0 = vector.load %arg1[%c0, %c0_0] : memref<8x32xf32, #tpu.memory_space<vmem>>, vector<8x32xf32>
    %1 = arith.truncf %0 : vector<8x32xf32> to vector<8x32xbf16>
    %c0_1 = arith.constant 0 : index
    %c0_2 = arith.constant 0 : index
    %2 = vector.load %arg2[%c0_1, %c0_2] : memref<64x32xbf16, #tpu.memory_space<vmem>>, vector<64x32xbf16>
    %cst = arith.constant dense<0.000000e+00> : vector<64x8xf32>
    %3 = tpu.matmul %2, %1, %cst {dimension_numbers = #tpu.dot_dimension_numbers<[1], [1], [0], [0], [0, 0, 1, 0], [], []>} : vector<64x32xbf16>, vector<8x32xbf16>, vector<64x8xf32> -> vector<64x8xf32>
    %c0_3 = arith.constant 0 : index
    %c0_4 = arith.constant 0 : index
    %4 = vector.load %arg3[%c0_3, %c0_4] : memref<64x1xf32, #tpu.memory_space<vmem>>, vector<64x1xf32>
    %5 = vector.broadcast %4 : vector<64x1xf32> to vector<64x8xf32>
    %6 = arith.addf %3, %5 : vector<64x8xf32>
    %cst_5 = arith.constant 0.000000e+00 : f32
    %7 = vector.broadcast %cst_5 : f32 to vector<64x8xf32>
    %8 = arith.maximumf %6, %7 : vector<64x8xf32>
    %c0_6 = arith.constant 0 : index
    %c0_7 = arith.constant 0 : index
    %9 = vector.load %arg4[%c0_6, %c0_7] : memref<32x64xbf16, #tpu.memory_space<vmem>>, vector<32x64xbf16>
    %10 = arith.truncf %8 : vector<64x8xf32> to vector<64x8xbf16>
    %cst_8 = arith.constant dense<0.000000e+00> : vector<32x8xf32>
    %11 = tpu.matmul %9, %10, %cst_8 {dimension_numbers = #tpu.dot_dimension_numbers<[1], [0], [0], [1], [0, 0, 1, 1], [], []>} : vector<32x64xbf16>, vector<64x8xbf16>, vector<32x8xf32> -> vector<32x8xf32>
    %c0_9 = arith.constant 0 : index
    %c0_10 = arith.constant 0 : index
    %12 = vector.load %arg5[%c0_9, %c0_10] : memref<32x1xf32, #tpu.memory_space<vmem>>, vector<32x1xf32>
    %13 = vector.broadcast %12 : vector<32x1xf32> to vector<32x8xf32>
    %14 = arith.addf %11, %13 : vector<32x8xf32>
    %cst_11 = arith.constant 0.000000e+00 : f32
    %15 = vector.broadcast %cst_11 : f32 to vector<32x8xf32>
    %16 = arith.maximumf %14, %15 : vector<32x8xf32>
    %c0_12 = arith.constant 0 : index
    %c0_13 = arith.constant 0 : index
    %17 = vector.load %arg6[%c0_12, %c0_13] : memref<32x1xf32, #tpu.memory_space<vmem>>, vector<32x1xf32>
    %18 = vector.broadcast %17 : vector<32x1xf32> to vector<32x8xf32>
    %19 = arith.mulf %16, %18 : vector<32x8xf32>
    %cst_14 = arith.constant dense<0.000000e+00> : vector<8xf32>
    %20 = vector.multi_reduction <add>, %19, %cst_14 [0] : vector<32x8xf32> to vector<8xf32>
    %21 = vector.shape_cast %20 : vector<8xf32> to vector<1x8xf32>
    %c0_15 = arith.constant 0 : index
    %22 = memref.load %arg7[%c0_15] : memref<1xf32, #tpu.memory_space<smem>>
    %23 = vector.broadcast %22 : f32 to vector<1x8xf32>
    %24 = arith.addf %21, %23 : vector<1x8xf32>
    %c0_16 = arith.constant 0 : index
    %c0_17 = arith.constant 0 : index
    %c0_18 = arith.constant 0 : index
    %25 = vector.load %arg8[%c0_16, %c0_17, %c0_18] : memref<1x1x8xf32, #tpu.memory_space<vmem>>, vector<1x1x8xf32>
    %26 = vector.shape_cast %25 : vector<1x1x8xf32> to vector<1x8xf32>
    %27 = vector.shape_cast %24 : vector<1x8xf32> to vector<1x1x8xf32>
    tpu.vector_store %arg8[%c0_16, %c0_17, %c0_18], %27 {strides = array<i32>} : memref<1x1x8xf32, #tpu.memory_space<vmem>>, vector<1x1x8xf32>,
    return
  }
  func.func @transform_0(%arg0: i32) -> (i32, i32) {
    %c0_i32 = arith.constant 0 : i32
    %c0_i32_0 = arith.constant 0 : i32
    return %arg0, %c0_i32 : i32, i32
  }
  func.func @transform_1(%arg0: i32) -> (i32, i32) {
    %c0_i32 = arith.constant 0 : i32
    %c0_i32_0 = arith.constant 0 : i32
    %c0_i32_1 = arith.constant 0 : i32
    return %c0_i32, %c0_i32_0 : i32, i32
  }
  func.func @transform_2(%arg0: i32) -> (i32, i32) {
    %c0_i32 = arith.constant 0 : i32
    %c0_i32_0 = arith.constant 0 : i32
    %c0_i32_1 = arith.constant 0 : i32
    return %c0_i32, %c0_i32_0 : i32, i32
  }
  func.func @transform_3(%arg0: i32) -> (i32, i32) {
    %c0_i32 = arith.constant 0 : i32
    %c0_i32_0 = arith.constant 0 : i32
    %c0_i32_1 = arith.constant 0 : i32
    return %c0_i32, %c0_i32_0 : i32, i32
  }
  func.func @transform_4(%arg0: i32) -> (i32, i32) {
    %c0_i32 = arith.constant 0 : i32
    %c0_i32_0 = arith.constant 0 : i32
    %c0_i32_1 = arith.constant 0 : i32
    return %c0_i32, %c0_i32_0 : i32, i32
  }
  func.func @transform_5(%arg0: i32) -> (i32, i32) {
    %c0_i32 = arith.constant 0 : i32
    %c0_i32_0 = arith.constant 0 : i32
    %c0_i32_1 = arith.constant 0 : i32
    return %c0_i32, %c0_i32_0 : i32, i32
  }
  func.func @transform_6(%arg0: i32) -> i32 {
    %c0_i32 = arith.constant 0 : i32
    %c0_i32_0 = arith.constant 0 : i32
    return %c0_i32 : i32
  }
  func.func @transform_7(%arg0: i32) -> (i32, i32, i32) {
    %c0_i32 = arith.constant 0 : i32
    %c0_i32_0 = arith.constant 0 : i32
    %c0_i32_1 = arith.constant 0 : i32
    return %arg0, %c0_i32, %c0_i32_0 : i32, i32, i32
  }
}

</mosaic_0001>

<llo_original>
// kernel: tpu_custom_call.1
$region0: #{tpu_custom_call.1}
  #allocation0 [shape = 'u32[]', space=smem, size = 0x4, offset = 0x4, fixed_abs, tag = 'smem constant byte address 0x4 - core index']
  #allocation1 [shape = 'u32[144,128]{1,0:T(1,128)}', space=vmem, size = 0x12000, scoped, tag = 'internal scratch']
  #allocation2 [shape = 'f32[1]{0:T(128)S(6)}', space=smem, size = 0x200, scoped, tag = 'scoped memory for tpu_custom_call.1']
  %s0 = inlined_call_operand.vmem [shape: f32[8,32], index: 0, kind: input, shape index: {}]
  %s1 = inlined_call_operand.vmem [shape: bf16[64,32], index: 1, kind: input, shape index: {}]
  %s2 = inlined_call_operand.vmem [shape: f32[64,1], index: 2, kind: input, shape index: {}]
  %s3 = inlined_call_operand.vmem [shape: bf16[32,64], index: 3, kind: input, shape index: {}]
  %s4 = inlined_call_operand.vmem [shape: f32[32,1], index: 4, kind: input, shape index: {}]
  %s5 = inlined_call_operand.vmem [shape: f32[32,1], index: 5, kind: input, shape index: {}]
  %s6 = inlined_call_operand.<no memory space> [shape: f32[1], index: 6, kind: input, shape index: {}]
  %s7 = inlined_call_operand.hbm [shape: f32[1,1,8], index: 7, kind: output, shape index: {}]
  %s8 = sld [smem:[#allocation0]]
  $region38: #{tpu_custom_call.1} parent=0
    _
  %s10 = ssub.s32 1, %s8
  %s11 = scalar_select 0, %s10, %s8
  %12 = sst [smem:[#allocation2]] %s6
  $region1: #{tpu_custom_call.1} parent=0
    #allocation3 [shape = 'u8[512]{0}', space=vmem, size = 0x400, scoped, tag = 'output window, operand 0, single buffered']
    #allocation4 [shape = 's32[1]{0}', space=sflag, size = 0x4, scoped, tag = 'scoped memory for tpu_custom_call.1']
    %13 = vsyncpa [#allocation4], 0
    // Predicated region
    $region2: #{tpu_custom_call.1} parent=1 // pred_check
      _
    $region3: #{tpu_custom_call.1} parent=1 // pred_check_branch
      %15 = sbr.rel (0) target = $region5
    $region4: #{tpu_custom_call.1} parent=1 // pred_region
      _
    $region5: #{tpu_custom_call.1} parent=1 // pred_fallthru
      _
    // Predicated region
    $region6: #{tpu_custom_call.1} parent=1 // pred_check
      _
    $region7: #{tpu_custom_call.1} parent=1 // pred_check_branch
      %17 = sbr.rel (0) target = $region9
    $region8: #{tpu_custom_call.1} parent=1 // pred_region
      _
    $region9: #{tpu_custom_call.1} parent=1 // pred_fallthru
      _
    // Predicated region
    $region10: #{tpu_custom_call.1} parent=1 // pred_check
      _
    $region11: #{tpu_custom_call.1} parent=1 // pred_check_branch
      %19 = sbr.rel (0) target = $region13
    $region12: #{tpu_custom_call.1} parent=1 // pred_region
      _
    $region13: #{tpu_custom_call.1} parent=1 // pred_fallthru
      _
    // Predicated region
    $region14: #{tpu_custom_call.1} parent=1 // pred_check
      _
    $region15: #{tpu_custom_call.1} parent=1 // pred_check_branch
      %21 = sbr.rel (0) target = $region17
    $region16: #{tpu_custom_call.1} parent=1 // pred_region
      _
    $region17: #{tpu_custom_call.1} parent=1 // pred_fallthru
      _
    // Predicated region
    $region18: #{tpu_custom_call.1} parent=1 // pred_check
      _
    $region19: #{tpu_custom_call.1} parent=1 // pred_check_branch
      %23 = sbr.rel (0) target = $region21
    $region20: #{tpu_custom_call.1} parent=1 // pred_region
      _
    $region21: #{tpu_custom_call.1} parent=1 // pred_fallthru
      _
    // Predicated region
    $region22: #{tpu_custom_call.1} parent=1 // pred_check
      _
    $region23: #{tpu_custom_call.1} parent=1 // pred_check_branch
      %25 = sbr.rel (0) target = $region25
    $region24: #{tpu_custom_call.1} parent=1 // pred_region
      _
    $region25: #{tpu_custom_call.1} parent=1 // pred_fallthru
      _
    // Predicated region
    $region26: #{tpu_custom_call.1} parent=1 // pred_check
      _
    $region27: #{tpu_custom_call.1} parent=1 // pred_check_branch
      %27 = sbr.rel (0) target = $region29
    $region28: #{tpu_custom_call.1} parent=1 // pred_region
      _
    $region29: #{tpu_custom_call.1} parent=1 // pred_fallthru
      _
    %v29 = vld [vmem:[%s0] sm:$0xff]
    %v30 = vpack.c.bf16 %v29, %v29
    %v31 = vld [vmem:[%s1] sm:$0xf]
    %v32 = vld [vmem:[%s1 + $0x4] sm:$0xf]
    %v33 = vld [vmem:[%s1 + $0x8] sm:$0xf]
    %v34 = vld [vmem:[%s1 + $0xc] sm:$0xf]
    %v35 = vld [vmem:[%s1 + $0x10] sm:$0xf]
    %v36 = vld [vmem:[%s1 + $0x14] sm:$0xf]
    %v37 = vld [vmem:[%s1 + $0x18] sm:$0xf]
    %v38 = vld [vmem:[%s1 + $0x1c] sm:$0xf]
    %v39 = vld [vmem:[%s2] sm:$0xff]
    %v40 = vld [vmem:[%s2 + $0x8] sm:$0xff]
    %v41 = vld [vmem:[%s2 + $0x10] sm:$0xff]
    %v42 = vld [vmem:[%s2 + $0x18] sm:$0xff]
    %v43 = vld [vmem:[%s2 + $0x20] sm:$0xff]
    %v44 = vld [vmem:[%s2 + $0x28] sm:$0xff]
    %v45 = vld [vmem:[%s2 + $0x30] sm:$0xff]
    %v46 = vld [vmem:[%s2 + $0x38] sm:$0xff]
    %48 = vset.pattern.permute.xlu0 0
    %49 = vperm.xlu0 %48, %v39
    %v50 = vpop.permute.xlu0 %49
    %53 = vset.pattern.permute.xlu0 0
    %54 = vperm.xlu0 %53, %v40
    %v55 = vpop.permute.xlu0 %54
    %58 = vset.pattern.permute.xlu0 0
    %59 = vperm.xlu0 %58, %v41
    %v60 = vpop.permute.xlu0 %59
    %63 = vset.pattern.permute.xlu0 0
    %64 = vperm.xlu0 %63, %v42
    %v65 = vpop.permute.xlu0 %64
    %68 = vset.pattern.permute.xlu0 0
    %69 = vperm.xlu0 %68, %v43
    %v70 = vpop.permute.xlu0 %69
    %73 = vset.pattern.permute.xlu0 0
    %74 = vperm.xlu0 %73, %v44
    %v75 = vpop.permute.xlu0 %74
    %78 = vset.pattern.permute.xlu0 0
    %79 = vperm.xlu0 %78, %v45
    %v80 = vpop.permute.xlu0 %79
    %83 = vset.pattern.permute.xlu0 0
    %84 = vperm.xlu0 %83, %v46
    %v85 = vpop.permute.xlu0 %84
    %v95 = vunpack.c.l.b16 %v31
    %v96 = vunpack.c.l.b16 %v32
    %v97 = vunpack.c.l.b16 %v33
    %v98 = vunpack.c.l.b16 %v34
    %v99 = vunpack.c.l.b16 %v35
    %v100 = vunpack.c.l.b16 %v36
    %v101 = vunpack.c.l.b16 %v37
    %v102 = vunpack.c.l.b16 %v38
    %v103 = vpack.c.b16 %v96, %v95
    %v104 = vpack.c.b16 %v98, %v97
    %v105 = vpack.c.b16 %v100, %v99
    %v106 = vpack.c.b16 %v102, %v101
    %vm107 = vcmask 261120
    %v109 = vsel %vm107, %v103, 0
    %v112 = vsel %vm107, %v104, 0
    %v115 = vsel %vm107, %v105, 0
    %v118 = vsel %vm107, %v106, 0
    %v121 = vsel %vm107, %v30, 0
    %123 = vmatprep.subr.bf16.mxu0 0
    %124 = vmatpush1.bf16.xpose.msra.mxu0 0
    %125 = vmatprep.subr.bf16.mxu0 0
    %126 = vmatpush1.bf16.xpose.msra.mxu0 0
    %127 = vmatprep.subr.bf16.mxu0 0
    %128 = vmatpush1.bf16.xpose.msra.mxu0 0
    %129 = vmatprep.subr.bf16.mxu0 0
    %130 = vmatpush1.bf16.xpose.msra.mxu0 0
    %131 = vmatprep.subr.bf16.mxu0 0
    %132 = vmatpush1.bf16.xpose.msra.mxu0 0
    %133 = vmatprep.subr.bf16.mxu0 0
    %134 = vmatpush1.bf16.xpose.msra.mxu0 0
    %135 = vmatprep.subr.bf16.mxu0 0
    %136 = vmatpush1.bf16.xpose.msra.mxu0 0
    %137 = vmatprep.subr.bf16.mxu0 0
    %138 = vmatpush1.bf16.xpose.msra.mxu0 %v121
    %139 = vmatprep.subr.bf16.mxu0 0
    %140 = vmatpush2.bf16.xpose.msra.mxu0 0
    %141 = vmatprep.subr.bf16.mxu0 0
    %142 = vmatpush2.bf16.xpose.msra.mxu0 0
    %143 = vmatprep.subr.bf16.mxu0 0
    %144 = vmatpush2.bf16.xpose.msra.mxu0 0
    %145 = vmatprep.subr.bf16.mxu0 0
    %146 = vmatpush2.bf16.xpose.msra.mxu0 0
    %147 = vmatprep.subr.bf16.mxu0 0
    %148 = vmatpush2.bf16.xpose.msra.mxu0 0
    %149 = vmatprep.subr.bf16.mxu0 0
    %150 = vmatpush2.bf16.xpose.msra.mxu0 0
    %151 = vmatprep.subr.bf16.mxu0 0
    %152 = vmatpush2.bf16.xpose.msra.mxu0 0
    %153 = vmatprep.subr.bf16.mxu0 0
    %154 = vmatpush2.bf16.xpose.msra.mxu0 0
    %155 = vmatprep.mubr.bf16.mxu0 0
    %156 = vmatmul.mubr.bf16.gmra.mxu0 %v109
    %v157 = vpop.f32.mrf.mxu0
    %v158 = vadd.f32 %v50, %v157
    %v159 = vpop.f32.mrf.mxu0
    %v160 = vpop.f32.mrf.mxu0
    %v161 = vadd.f32 %v55, %v160
    %v162 = vpop.f32.mrf.mxu0
    %163 = vmatprep.mubr.bf16.mxu0 0
    %164 = vmatmul.mubr.bf16.gmra.mxu0 %v112
    %v165 = vpop.f32.mrf.mxu0
    %v166 = vadd.f32 %v60, %v165
    %v167 = vpop.f32.mrf.mxu0
    %v168 = vpop.f32.mrf.mxu0
    %v169 = vadd.f32 %v65, %v168
    %v170 = vpop.f32.mrf.mxu0
    %171 = vmatprep.mubr.bf16.mxu0 0
    %172 = vmatmul.mubr.bf16.gmra.mxu0 %v115
    %v173 = vpop.f32.mrf.mxu0
    %v174 = vadd.f32 %v70, %v173
    %v175 = vpop.f32.mrf.mxu0
    %v176 = vpop.f32.mrf.mxu0
    %v177 = vadd.f32 %v75, %v176
    %v178 = vpop.f32.mrf.mxu0
    %179 = vmatprep.mubr.bf16.mxu0 0
    %180 = vmatmul.mubr.bf16.gmra.mxu0 %v118
    %v181 = vpop.f32.mrf.mxu0
    %v182 = vadd.f32 %v80, %v181
    %v183 = vpop.f32.mrf.mxu0
    %v184 = vpop.f32.mrf.mxu0
    %v185 = vadd.f32 %v85, %v184
    %v186 = vpop.f32.mrf.mxu0
    %187 = vdwg.mxu0
    %v188 = vmax.f32 %v158, 0.0
    %v189 = vmax.f32 %v161, 0.0
    %v190 = vmax.f32 %v166, 0.0
    %v191 = vmax.f32 %v169, 0.0
    %v192 = vmax.f32 %v174, 0.0
    %v193 = vmax.f32 %v177, 0.0
    %v194 = vmax.f32 %v182, 0.0
    %v195 = vmax.f32 %v185, 0.0
    %v196 = vld [vmem:[%s3] sm:$0xf]
    %v197 = vld [vmem:[%s3 + $0x4] sm:$0xf]
    %v198 = vld [vmem:[%s3 + $0x8] sm:$0xf]
    %v199 = vld [vmem:[%s3 + $0xc] sm:$0xf]
    %v200 = vpack.c.bf16 %v189, %v188
    %v201 = vpack.c.bf16 %v191, %v190
    %v202 = vpack.c.bf16 %v193, %v192
    %v203 = vpack.c.bf16 %v195, %v194
    %v204 = vld [vmem:[%s4] sm:$0xff]
    %v205 = vld [vmem:[%s4 + $0x8] sm:$0xff]
    %v206 = vld [vmem:[%s4 + $0x10] sm:$0xff]
    %v207 = vld [vmem:[%s4 + $0x18] sm:$0xff]
    %209 = vset.pattern.permute.xlu0 0
    %210 = vperm.xlu0 %209, %v204
    %v211 = vpop.permute.xlu0 %210
    %214 = vset.pattern.permute.xlu0 0
    %215 = vperm.xlu0 %214, %v205
    %v216 = vpop.permute.xlu0 %215
    %219 = vset.pattern.permute.xlu0 0
    %220 = vperm.xlu0 %219, %v206
    %v221 = vpop.permute.xlu0 %220
    %224 = vset.pattern.permute.xlu0 0
    %225 = vperm.xlu0 %224, %v207
    %v226 = vpop.permute.xlu0 %225
    %v232 = vunpack.c.l.b16 %v196
    %v233 = vunpack.c.l.b16 %v197
    %v234 = vunpack.c.l.b16 %v198
    %v235 = vunpack.c.l.b16 %v199
    %v236 = vpack.c.b16 %v233, %v232
    %v237 = vpack.c.b16 %v235, %v234
    %vm238 = vcmask 523264
    %v240 = vsel %vm238, %v236, 0
    %v243 = vsel %vm238, %v237, 0
    %245 = vmatprep.subr.bf16.mxu0 0
    %246 = vmatpush1.bf16.msra.mxu0 0
    %247 = vmatprep.subr.bf16.mxu0 0
    %248 = vmatpush1.bf16.msra.mxu0 0
    %249 = vmatprep.subr.bf16.mxu0 0
    %250 = vmatpush1.bf16.msra.mxu0 0
    %251 = vmatprep.subr.bf16.mxu0 0
    %252 = vmatpush1.bf16.msra.mxu0 0
    %253 = vmatprep.subr.bf16.mxu0 0
    %254 = vmatpush1.bf16.msra.mxu0 %v203
    %255 = vmatprep.subr.bf16.mxu0 0
    %256 = vmatpush1.bf16.msra.mxu0 %v202
    %257 = vmatprep.subr.bf16.mxu0 0
    %258 = vmatpush1.bf16.msra.mxu0 %v201
    %259 = vmatprep.subr.bf16.mxu0 0
    %260 = vmatpush1.bf16.msra.mxu0 %v200
    %261 = vmatprep.subr.bf16.mxu0 0
    %262 = vmatpush2.bf16.msra.mxu0 0
    %263 = vmatprep.subr.bf16.mxu0 0
    %264 = vmatpush2.bf16.msra.mxu0 0
    %265 = vmatprep.subr.bf16.mxu0 0
    %266 = vmatpush2.bf16.msra.mxu0 0
    %267 = vmatprep.subr.bf16.mxu0 0
    %268 = vmatpush2.bf16.msra.mxu0 0
    %269 = vmatprep.subr.bf16.mxu0 0
    %270 = vmatpush2.bf16.msra.mxu0 0
    %271 = vmatprep.subr.bf16.mxu0 0
    %272 = vmatpush2.bf16.msra.mxu0 0
    %273 = vmatprep.subr.bf16.mxu0 0
    %274 = vmatpush2.bf16.msra.mxu0 0
    %275 = vmatprep.subr.bf16.mxu0 0
    %276 = vmatpush2.bf16.msra.mxu0 0
    %277 = vmatprep.mubr.bf16.mxu0 0
    %278 = vmatmul.mubr.bf16.gmra.mxu0 %v240
    %v279 = vpop.f32.mrf.mxu0
    %v280 = vadd.f32 %v211, %v279
    %v281 = vpop.f32.mrf.mxu0
    %v282 = vpop.f32.mrf.mxu0
    %v283 = vadd.f32 %v216, %v282
    %v284 = vpop.f32.mrf.mxu0
    %285 = vmatprep.mubr.bf16.mxu0 0
    %286 = vmatmul.mubr.bf16.gmra.mxu0 %v243
    %v287 = vpop.f32.mrf.mxu0
    %v288 = vadd.f32 %v221, %v287
    %v289 = vpop.f32.mrf.mxu0
    %v290 = vpop.f32.mrf.mxu0
    %v291 = vadd.f32 %v226, %v290
    %v292 = vpop.f32.mrf.mxu0
    %293 = vdwg.mxu0
    %v294 = vmax.f32 %v280, 0.0
    %v295 = vmax.f32 %v283, 0.0
    %v296 = vmax.f32 %v288, 0.0
    %v297 = vmax.f32 %v291, 0.0
    %v298 = vld [vmem:[%s5] sm:$0xff]
    %v299 = vld [vmem:[%s5 + $0x8] sm:$0xff]
    %v300 = vld [vmem:[%s5 + $0x10] sm:$0xff]
    %v301 = vld [vmem:[%s5 + $0x18] sm:$0xff]
    %303 = vset.pattern.permute.xlu0 0
    %304 = vperm.xlu0 %303, %v298
    %v305 = vpop.permute.xlu0 %304
    %308 = vset.pattern.permute.xlu0 0
    %309 = vperm.xlu0 %308, %v299
    %v310 = vpop.permute.xlu0 %309
    %313 = vset.pattern.permute.xlu0 0
    %314 = vperm.xlu0 %313, %v300
    %v315 = vpop.permute.xlu0 %314
    %318 = vset.pattern.permute.xlu0 0
    %319 = vperm.xlu0 %318, %v301
    %v320 = vpop.permute.xlu0 %319
    %v322 = vmul.f32 %v294, %v305
    %v323 = vmul.f32 %v295, %v310
    %v324 = vmul.f32 %v296, %v315
    %v325 = vmul.f32 %v297, %v320
    %vm326 = vcmask 64512
    %v327 = vsel %vm326, %v322, 0.0
    %v328 = vsel %vm326, %v323, 0.0
    %v329 = vadd.f32 %v327, %v328
    %v330 = vsel %vm326, %v324, 0.0
    %v331 = vadd.f32 %v329, %v330
    %v332 = vsel %vm326, %v325, 0.0
    %v333 = vadd.f32 %v331, %v332
    %v334 = vrot.slane %v333, 4
    %v335 = vadd.f32 %v333, %v334
    %v336 = vrot.slane %v335, 2
    %v337 = vadd.f32 %v335, %v336
    %v338 = vrot.slane %v337, 1
    %v339 = vadd.f32 %v337, %v338
    %s340 = sld [smem:[#allocation2]]
    %v341 = vstv %s340
    %v342 = vadd.f32 %v339, %v341
    %vm343 = vcmask 57344
    %344 = vst.msk [vmem:[#allocation3] sm:$0x1] %vm343, %v342
    // Predicated region
    $region30: #{tpu_custom_call.1} parent=1 // pred_check
      _
    $region31: #{tpu_custom_call.1} parent=1 // pred_check_branch
      %346 = sbr.rel (0) target = $region33
    $region32: #{tpu_custom_call.1} parent=1 // pred_region
      %s348 = ssub.s32 16, 16
      %349 = vsyncadd [#allocation4], %s348
      %s351 = sshll.u32 [#allocation3], 4
      %s352 = int_to_ptr.vmem [resolvable:$true] %s351
      %354 = dma.vmem_to_hbm [thread:$0]  %s352, 16, %s7, [#allocation4]
    $region33: #{tpu_custom_call.1} parent=1 // pred_fallthru
      _
    // Predicated region
    $region34: #{tpu_custom_call.1} parent=1 // pred_check
      _
    $region35: #{tpu_custom_call.1} parent=1 // pred_check_branch
      %356 = sbr.rel (0) target = $region37
    $region36: #{tpu_custom_call.1} parent=1 // pred_region
      %357 = dma.done [#allocation4], 16
    $region37: #{tpu_custom_call.1} parent=1 // pred_fallthru
      _
    %358 = vsyncpa [#allocation4], 1

</llo_original>
